<compile_context>
chip_gen: v7x
topology: tpu7x:2x2x1
jax: 0.10.0
libtpu: 0.0.40
codegen_flags: <defaults>
</compile_context>

<pallas_src>
import functools

import jax
import jax.numpy as jnp
from jax import lax
from jax.experimental import pallas as pl
from jax.experimental.pallas import tpu as pltpu


HALO = 8  # sublane-aligned halo rows fetched from neighbouring sequence tiles (>= k//2)


def _vmem_limit_bytes():
    # ~3/4 of physical VMEM: ~96 MiB on v5e/v6e (128 MiB physical), 48 MiB on v7x (64 MiB).
    try:
        cap = int(pltpu.get_tpu_info().vmem_capacity_bytes)
    except Exception:  # older jax / query unavailable: safe-everywhere default
        cap = 64 * 1024 * 1024
    return int(min((cap * 3) // 4, 100 * 1024 * 1024))


def _bf16_elementwise():
    # bf16 VPU/EUP exists on v6e/v7x only; keep f32 elementwise math elsewhere.
    try:
        kind = jax.devices()[0].device_kind.lower()
    except Exception:
        return False
    return not any(v in kind for v in ("v2", "v3", "v4", "v5"))


_CP = pltpu.CompilerParams(
    dimension_semantics=("parallel", "parallel"),
    vmem_limit_bytes=_vmem_limit_bytes(),
)
_BF16_EWISE = _bf16_elementwise()


# ----------------------------------------------------------------------------- helpers
def _gelu_tanh(x):
    # tanh-approximate GELU: one EUP transcendental per element instead of ~14 VALU ops.
    # TODO(synk): PyTorch nn.GELU() defaults to exact erf; the tanh form deviates ~1e-3.
    c = 0.7978845608028654  # sqrt(2/pi)
    return 0.5 * x * (1.0 + jnp.tanh(c * (x + 0.044715 * (x * x * x))))


def _layernorm_lastdim(x, g, b, eps=1e-6):
    # Matches PyTorch LayerNorm semantics (biased variance), f32 math.
    mu = jnp.mean(x, axis=-1, keepdims=True)
    xc = x - mu
    var = jnp.mean(xc * xc, axis=-1, keepdims=True)
    return xc * lax.rsqrt(var + eps) * g + b


def _im2col(x, k):
    # (N, L, Cin) -> (N, L, k*Cin); zero padding at the sequence edges.  Done once as JAX
    # glue on the tiny raw input so the stem conv is a single MXU matmul in-kernel.
    # TODO(synk): for large Cin/L do this gather in-kernel with the same halo scheme.
    n, l, cin = x.shape
    pad = k // 2
    xp = jnp.pad(x, ((0, 0), (pad, pad), (0, 0)))
    cols = [xp[:, i:i + l, :] for i in range(k)]
    return jnp.concatenate(cols, axis=-1)


def _round_up(v, m):
    return (v + m - 1) // m * m


def _pick_seq_tile(length, c):
    # ~1-2 MiB f32 working set per (TL, C) buffer: amortizes the ~0.35us per-grid-step
    # overhead at small C and keeps the largest stage inside v7x's VMEM budget.
    cap = max(HALO, (2 * 1024 * 1024) // (4 * c))
    for t in (4096, 2048, 1024, 512, 256, 128, 64, 32, 16, 8):
        if t <= cap and t <= length and length % t == 0:
            return t
    raise ValueError(f"sequence length {length} must be a multiple of {HALO}")


# ----------------------------------------------------------------------------- kernels
def stem_kernel(xcol_ref, w_ref, b_ref, g_ref, beta_ref, o_ref):
    # Fused stem: im2col Conv1d(k, pad=k//2) as one bf16 MXU matmul (f32 accumulation)
    # followed by the channels-first LayerNorm.
    y = jnp.dot(xcol_ref[0], w_ref[...], preferred_element_type=jnp.float32) + b_ref[...]
    o_ref[0] = _layernorm_lastdim(y, g_ref[...], beta_ref[...]).astype(o_ref.dtype)


def convnext_block_kernel(xl_ref, xc_ref, xr_ref, wdw_ref, bdw_ref,
                          lng_ref, lnb_ref, w1_ref, b1_ref, w2_ref, b2_ref,
                          *rest, ksize, epilogue, bf16_ewise):
    # Fused ConvNeXt block: depthwise conv -> LN -> pwconv1 -> GELU -> pwconv2(+gamma)
    #                       -> residual add -> optional epilogue
    #                          ("ln": final encoder LayerNorm, "ds": LN + 1x1 downsample).
    if epilogue == "ln":
        eg_ref, eb_ref, o_ref = rest
    elif epilogue == "ds":
        eg_ref, eb_ref, ew_ref, ebias_ref, o_ref = rest
    else:
        (o_ref,) = rest

    l = pl.program_id(1)
    nl = pl.num_programs(1)
    tl = xc_ref.shape[1]
    pad = ksize // 2

    # Halo handling: xl/xr are 8-row blocks of the SAME unpadded activation fetched with
    # clamped index maps; they are zeroed at the sequence boundaries (== zero padding).
    cur = xc_ref[0].astype(jnp.float32)                     # (TL, C), residual source
    lmask = (l > 0).astype(jnp.float32)
    rmask = (l < nl - 1).astype(jnp.float32)
    left = xl_ref[0].astype(jnp.float32) * lmask
    right = xr_ref[0].astype(jnp.float32) * rmask
    xw = jnp.concatenate([left, cur, right], axis=0)        # (TL + 2*HALO, C), aligned pieces
    win = tl + 2 * HALO

    # Depthwise conv along the sequence axis: each tap is an XLU roll of the window plus
    # an aligned [0:TL] slice (no sublane-misaligned VMEM copies), then a VPU FMA.
    acc = None
    for k in range(ksize):
        off = HALO - pad + k                                # 0 < off < 2*HALO
        shifted = pltpu.roll(xw, shift=(win - off) % win, axis=0)  # shifted[t] == xw[t+off]
        term = shifted[:tl, :] * wdw_ref[k]                 # wdw_ref[k]: (1, C)
        acc = term if acc is None else acc + term
    dw = acc + bdw_ref[...]

    # LayerNorm over channels, then pointwise MLP (bf16 MXU matmuls, f32 accumulation).
    xn = _layernorm_lastdim(dw, lng_ref[...], lnb_ref[...])
    h = jnp.dot(xn.astype(jnp.bfloat16), w1_ref[...],
                preferred_element_type=jnp.float32) + b1_ref[...]
    if bf16_ewise:
        h = _gelu_tanh(h.astype(jnp.bfloat16))              # bf16 VPU/EUP (v6e/v7x)
    else:
        h = _gelu_tanh(h).astype(jnp.bfloat16)              # f32 VPU + EUP tanh (v5e & older)
    y = jnp.dot(h, w2_ref[...], preferred_element_type=jnp.float32) + b2_ref[...]
    y = cur + y                                             # layer-scale gamma folded in w2/b2

    if epilogue == "ln":                                    # encoder's final LayerNorm
        y = _layernorm_lastdim(y, eg_ref[...], eb_ref[...])
    elif epilogue == "ds":                                  # next stage's LN + 1x1 Conv1d
        yn = _layernorm_lastdim(y, eg_ref[...], eb_ref[...])
        y = jnp.dot(yn.astype(jnp.bfloat16), ew_ref[...],
                    preferred_element_type=jnp.float32) + ebias_ref[...]
    o_ref[0] = y.astype(o_ref.dtype)


# ----------------------------------------------------------------------------- wrappers
def _vec_spec(c):
    # Loop-invariant (1, C) vector: single-buffer it (block index never changes).
    return pl.BlockSpec((1, c), lambda i, j: (0, 0), pipeline_mode=pl.Buffered(1))


def _weight_spec(shape):
    # Loop-invariant weight: single-buffered to halve its VMEM footprint (v7x budget).
    zeros = (0,) * len(shape)
    return pl.BlockSpec(shape, lambda i, j, _z=zeros: _z, pipeline_mode=pl.Buffered(1))


def stem(xcol, w, b, g, beta, tl):
    n, length, kcp = xcol.shape
    cout = w.shape[1]
    return pl.pallas_call(
        stem_kernel,
        out_shape=jax.ShapeDtypeStruct((n, length, cout), jnp.bfloat16),
        grid=(n, length // tl),
        in_specs=[pl.BlockSpec((1, tl, kcp), lambda i, j: (i, j, 0)),
                  _weight_spec(w.shape),
                  _vec_spec(cout), _vec_spec(cout), _vec_spec(cout)],
        out_specs=pl.BlockSpec((1, tl, cout), lambda i, j: (i, j, 0)),
        compiler_params=_CP,
    )(xcol, w, b, g, beta)


def convnext_block(x, p, ksize, tl, epilogue=None, out_dtype=jnp.bfloat16):
    n, length, c = x.shape
    ch = p["w1"].shape[1]
    nh = length // HALO                  # number of halo-granularity (8-row) blocks
    steps = tl // HALO

    # Halo blocks of the SAME unpadded activation: left = rows [l*TL-8, l*TL),
    # right = rows [(l+1)*TL, (l+1)*TL+8); clamped at the edges, masked in-kernel.
    # TODO(synk): a single overlapping (TL+16)-row element-offset fetch would drop the two
    # tiny halo DMAs per grid step.
    xl_spec = pl.BlockSpec((1, HALO, c),
                           lambda i, j: (i, jnp.maximum(j * steps - 1, 0), 0))
    xc_spec = pl.BlockSpec((1, tl, c), lambda i, j: (i, j, 0))
    xr_spec = pl.BlockSpec((1, HALO, c),
                           lambda i, j: (i, jnp.minimum((j + 1) * steps, nh - 1), 0))

    in_specs = [xl_spec, xc_spec, xr_spec,
                _weight_spec((ksize, 1, c)),                # depthwise taps
                _vec_spec(c), _vec_spec(c), _vec_spec(c),
                _weight_spec((c, ch)), _vec_spec(ch),
                _weight_spec((ch, c)), _vec_spec(c)]
    args = [x, x, x, p["wdw"], p["bdw"], p["ln_g"], p["ln_b"],
            p["w1"], p["b1"], p["w2"], p["b2"]]

    c_out = c
    ep_kind = None
    if epilogue is not None:
        ep_kind = epilogue[0]
        if ep_kind == "ln":
            in_specs += [_vec_spec(c), _vec_spec(c)]
            args += [epilogue[1], epilogue[2]]
        elif ep_kind == "ds":
            c_out = epilogue[3].shape[1]
            in_specs += [_vec_spec(c), _vec_spec(c),
                         _weight_spec(epilogue[3].shape), _vec_spec(c_out)]
            args += list(epilogue[1:])
        else:
            raise ValueError(ep_kind)

    kern = functools.partial(convnext_block_kernel, ksize=ksize, epilogue=ep_kind,
                             bf16_ewise=_BF16_EWISE)
    return pl.pallas_call(
        kern,
        out_shape=jax.ShapeDtypeStruct((n, length, c_out), out_dtype),
        grid=(n, length // tl),
        in_specs=in_specs,
        out_specs=pl.BlockSpec((1, tl, c_out), lambda i, j: (i, j, 0)),
        compiler_params=_CP,
    )(*args)


# ----------------------------------------------------------------------------- params
def init_params(key, cin, depths, dims, ksize, layer_scale):
    keys = iter(jax.random.split(key, 256))

    def tn(shape):  # trunc_normal_(std=0.02) ~ N(0, 0.02^2) (the +-2 cut is ~100 sigma away)
        return (0.02 * jax.random.normal(next(keys), shape)).astype(jnp.float32)

    ones = lambda c: jnp.ones((1, c), jnp.float32)
    zeros = lambda c: jnp.zeros((1, c), jnp.float32)

    kc = ksize * cin
    kc_pad = _round_up(kc, 8)                               # pad the stem contraction dim
    stem_w = jnp.zeros((kc_pad, dims[0]), jnp.float32).at[:kc].set(tn((kc, dims[0])))

    params = {
        # stem Conv1d weight stored im2col-style (pad(K*Cin), Cout), bf16 for the MXU
        "stem_w": stem_w.astype(jnp.bfloat16),
        "stem_b": zeros(dims[0]),
        "stem_ln_g": ones(dims[0]), "stem_ln_b": zeros(dims[0]),
        "norm_g": ones(dims[-1]), "norm_b": zeros(dims[-1]),
        "ds": [], "blocks": [],
    }
    for i in range(1, len(dims)):
        params["ds"].append({
            "ln_g": ones(dims[i - 1]), "ln_b": zeros(dims[i - 1]),
            "w": tn((dims[i - 1], dims[i])).astype(jnp.bfloat16),   # 1x1 Conv1d
            "b": zeros(dims[i]),
        })
    for d, dim in zip(depths, dims):
        blocks = []
        for _ in range(d):
            # layer-scale gamma (== layer_scale at init) folded into pwconv2.  When loading
            # real pretrained weights, fold gamma into BOTH w2 and b2.
            blocks.append({
                "wdw": tn((ksize, 1, dim)), "bdw": zeros(dim),      # depthwise Conv1d
                "ln_g": ones(dim), "ln_b": zeros(dim),
                "w1": tn((dim, 4 * dim)).astype(jnp.bfloat16), "b1": zeros(4 * dim),
                "w2": (tn((4 * dim, dim)) * layer_scale).astype(jnp.bfloat16),
                "b2": zeros(dim) * layer_scale,
            })
        params["blocks"].append(blocks)
    return params


# ----------------------------------------------------------------------------- forward
def convnext_encoder(x_ncl, params, depths, dims, ksize, seq_tile=None):
    """Input/output in PyTorch NCL layout; internally NLC (channels-last), bf16 in HBM."""
    assert len(depths) == len(dims)
    assert all(d >= 1 for d in depths), "each stage needs >= 1 block (epilogue fusion)"
    assert ksize // 2 <= HALO, "halo must cover the depthwise-conv receptive field"

    # TODO(synk): pad channel dims that are not multiples of 128 (e.g. 96) to 128 with
    # masked LayerNorm statistics so every store is lane-dense.
    x = jnp.transpose(x_ncl, (0, 2, 1)).astype(jnp.float32)   # (N, L, Cin)
    n, length, cin = x.shape
    assert length % HALO == 0, length

    def tile(c):
        t = _pick_seq_tile(length, c) if seq_tile is None else seq_tile
        assert length % t == 0 and t % HALO == 0, (length, t)
        return t

    # stem: Conv1d(k, pad=k//2) via im2col matmul, fused with channels-first LayerNorm
    xcol = _im2col(x, ksize)
    kc_pad = params["stem_w"].shape[0]
    if kc_pad > xcol.shape[-1]:
        xcol = jnp.pad(xcol, ((0, 0), (0, 0), (0, kc_pad - xcol.shape[-1])))
    x = stem(xcol.astype(jnp.bfloat16), params["stem_w"], params["stem_b"],
             params["stem_ln_g"], params["stem_ln_b"], tile(dims[0]))

    nstages = len(depths)
    for i in range(nstages):
        tl = tile(dims[i])
        for j in range(depths[i]):
            last_in_stage = (j == depths[i] - 1)
            if last_in_stage and i == nstages - 1:
                # fuse the encoder's final channels-first LayerNorm; keep f32 output
                ep, out_dtype = ("ln", params["norm_g"], params["norm_b"]), jnp.float32
            elif last_in_stage:
                # fuse the next stage's downsample (LayerNorm + 1x1 Conv1d) as epilogue
                ds = params["ds"][i]
                ep, out_dtype = ("ds", ds["ln_g"], ds["ln_b"], ds["w"], ds["b"]), jnp.bfloat16
            else:
                ep, out_dtype = None, jnp.bfloat16
            x = convnext_block(x, params["blocks"][i][j], ksize, tl,
                               epilogue=ep, out_dtype=out_dtype)

    # TODO(synk): keep the NLC layout and skip this HBM transpose if the consumer allows.
    return jnp.transpose(x, (0, 2, 1))                         # back to (N, C, L)


# ----------------------------------------------------------------------------- main
if __name__ == "__main__":
    N, CIN, L = 2, 4, 16
    depths = [2, 2]
    dims = [32, 64]
    KSIZE = 7
    SEQ_TILE = 8   # small tile so the multi-tile halo path is exercised; auto-picked otherwise

    key = jax.random.PRNGKey(0)
    k_par, k_x = jax.random.split(key)
    params = init_params(k_par, CIN, depths, dims, KSIZE, layer_scale=1e-6)
    x = jax.random.normal(k_x, (N, CIN, L), jnp.float32)       # PyTorch NCL input

    y = convnext_encoder(x, params, depths, dims, KSIZE, seq_tile=SEQ_TILE)
    y = jax.block_until_ready(y)
    assert y.shape == (N, dims[-1], L), y.shape
    assert bool(jnp.all(jnp.isfinite(y)))
    print("KERNEL_OK")
</pallas_src>

<mosaic_0001>
module attributes {stable_mosaic.version = 11 : i64} {
  func.func @stem_kernel(%arg0: i32, %arg1: i32, %arg2: memref<1x8x32xbf16, #tpu.memory_space<vmem>>, %arg3: memref<32x32xbf16, #tpu.memory_space<vmem>>, %arg4: memref<1x32xf32, #tpu.memory_space<vmem>>, %arg5: memref<1x32xf32, #tpu.memory_space<vmem>>, %arg6: memref<1x32xf32, #tpu.memory_space<vmem>>, %arg7: memref<1x8x32xbf16, #tpu.memory_space<vmem>>) attributes {dimension_semantics = [#tpu.dimension_semantics<parallel>, #tpu.dimension_semantics<parallel>], iteration_bounds = array<i64: 2, 2>, scalar_prefetch = 0 : i64, scratch_operands = 0 : i64, tpu.core_type = #tpu.core_type<tc>, window_params = [{transform_indices = @transform_0, window_bounds = array<i64: 1, 8, 32>}, {pipeline_mode = #tpu.pipeline_mode<synchronous>, transform_indices = @transform_1, window_bounds = array<i64: 32, 32>}, {pipeline_mode = #tpu.pipeline_mode<synchronous>, transform_indices = @transform_2, window_bounds = array<i64: 1, 32>}, {pipeline_mode = #tpu.pipeline_mode<synchronous>, transform_indices = @transform_3, window_bounds = array<i64: 1, 32>}, {pipeline_mode = #tpu.pipeline_mode<synchronous>, transform_indices = @transform_4, window_bounds = array<i64: 1, 32>}, {transform_indices = @transform_5, window_bounds = array<i64: 1, 8, 32>}]} {
    %c0 = arith.constant 0 : index
    %c0_0 = arith.constant 0 : index
    %c0_1 = arith.constant 0 : index
    %0 = vector.load %arg2[%c0, %c0_0, %c0_1] : memref<1x8x32xbf16, #tpu.memory_space<vmem>>, vector<1x8x32xbf16>
    %1 = vector.shape_cast %0 : vector<1x8x32xbf16> to vector<8x32xbf16>
    %c0_2 = arith.constant 0 : index
    %c0_3 = arith.constant 0 : index
    %2 = vector.load %arg3[%c0_2, %c0_3] : memref<32x32xbf16, #tpu.memory_space<vmem>>, vector<32x32xbf16>
    %cst = arith.constant dense<0.000000e+00> : vector<8x32xf32>
    %3 = tpu.matmul %1, %2, %cst {dimension_numbers = #tpu.dot_dimension_numbers<[1], [0], [0], [1], [0, 0, 1, 1], [], []>} : vector<8x32xbf16>, vector<32x32xbf16>, vector<8x32xf32> -> vector<8x32xf32>
    %c0_4 = arith.constant 0 : index
    %c0_5 = arith.constant 0 : index
    %4 = vector.load %arg4[%c0_4, %c0_5] : memref<1x32xf32, #tpu.memory_space<vmem>>, vector<1x32xf32>
    %5 = vector.broadcast %4 : vector<1x32xf32> to vector<8x32xf32>
    %6 = arith.addf %3, %5 : vector<8x32xf32>
    %c0_6 = arith.constant 0 : index
    %c0_7 = arith.constant 0 : index
    %7 = vector.load %arg5[%c0_6, %c0_7] : memref<1x32xf32, #tpu.memory_space<vmem>>, vector<1x32xf32>
    %c0_8 = arith.constant 0 : index
    %c0_9 = arith.constant 0 : index
    %8 = vector.load %arg6[%c0_8, %c0_9] : memref<1x32xf32, #tpu.memory_space<vmem>>, vector<1x32xf32>
    %cst_10 = arith.constant dense<0.000000e+00> : vector<8xf32>
    %9 = vector.multi_reduction <add>, %6, %cst_10 [1] : vector<8x32xf32> to vector<8xf32>
    %10 = vector.shape_cast %9 : vector<8xf32> to vector<8x1xf32>
    %cst_11 = arith.constant 3.200000e+01 : f32
    %11 = vector.broadcast %cst_11 : f32 to vector<8x1xf32>
    %12 = arith.divf %10, %11 : vector<8x1xf32>
    %13 = vector.broadcast %12 : vector<8x1xf32> to vector<8x32xf32>
    %14 = arith.subf %6, %13 : vector<8x32xf32>
    %15 = arith.mulf %14, %14 : vector<8x32xf32>
    %cst_12 = arith.constant dense<0.000000e+00> : vector<8xf32>
    %16 = vector.multi_reduction <add>, %15, %cst_12 [1] : vector<8x32xf32> to vector<8xf32>
    %17 = vector.shape_cast %16 : vector<8xf32> to vector<8x1xf32>
    %cst_13 = arith.constant 3.200000e+01 : f32
    %18 = vector.broadcast %cst_13 : f32 to vector<8x1xf32>
    %19 = arith.divf %17, %18 : vector<8x1xf32>
    %cst_14 = arith.constant 9.99999997E-7 : f32
    %20 = vector.broadcast %cst_14 : f32 to vector<8x1xf32>
    %21 = arith.addf %19, %20 : vector<8x1xf32>
    %22 = math.rsqrt %21 : vector<8x1xf32>
    %23 = vector.broadcast %22 : vector<8x1xf32> to vector<8x32xf32>
    %24 = arith.mulf %14, %23 : vector<8x32xf32>
    %25 = vector.broadcast %7 : vector<1x32xf32> to vector<8x32xf32>
    %26 = arith.mulf %24, %25 : vector<8x32xf32>
    %27 = vector.broadcast %8 : vector<1x32xf32> to vector<8x32xf32>
    %28 = arith.addf %26, %27 : vector<8x32xf32>
    %29 = arith.truncf %28 : vector<8x32xf32> to vector<8x32xbf16>
    %c0_15 = arith.constant 0 : index
    %c0_16 = arith.constant 0 : index
    %c0_17 = arith.constant 0 : index
    %30 = vector.load %arg7[%c0_15, %c0_16, %c0_17] : memref<1x8x32xbf16, #tpu.memory_space<vmem>>, vector<1x8x32xbf16>
    %31 = vector.shape_cast %30 : vector<1x8x32xbf16> to vector<8x32xbf16>
    %32 = vector.shape_cast %29 : vector<8x32xbf16> to vector<1x8x32xbf16>
    tpu.vector_store %arg7[%c0_15, %c0_16, %c0_17], %32 {strides = array<i32>} : memref<1x8x32xbf16, #tpu.memory_space<vmem>>, vector<1x8x32xbf16>,
    return
  }
  func.func @transform_0(%arg0: i32, %arg1: i32) -> (i32, i32, i32) {
    %c0_i32 = arith.constant 0 : i32
    %c0_i32_0 = arith.constant 0 : i32
    return %arg0, %arg1, %c0_i32 : i32, i32, i32
  }
  func.func @transform_1(%arg0: i32, %arg1: i32) -> (i32, i32) {
    %c0_i32 = arith.constant 0 : i32
    %c0_i32_0 = arith.constant 0 : i32
    %c0_i32_1 = arith.constant 0 : i32
    return %c0_i32, %c0_i32_0 : i32, i32
  }
  func.func @transform_2(%arg0: i32, %arg1: i32) -> (i32, i32) {
    %c0_i32 = arith.constant 0 : i32
    %c0_i32_0 = arith.constant 0 : i32
    %c0_i32_1 = arith.constant 0 : i32
    return %c0_i32, %c0_i32_0 : i32, i32
  }
  func.func @transform_3(%arg0: i32, %arg1: i32) -> (i32, i32) {
    %c0_i32 = arith.constant 0 : i32
    %c0_i32_0 = arith.constant 0 : i32
    %c0_i32_1 = arith.constant 0 : i32
    return %c0_i32, %c0_i32_0 : i32, i32
  }
  func.func @transform_4(%arg0: i32, %arg1: i32) -> (i32, i32) {
    %c0_i32 = arith.constant 0 : i32
    %c0_i32_0 = arith.constant 0 : i32
    %c0_i32_1 = arith.constant 0 : i32
    return %c0_i32, %c0_i32_0 : i32, i32
  }
  func.func @transform_5(%arg0: i32, %arg1: i32) -> (i32, i32, i32) {
    %c0_i32 = arith.constant 0 : i32
    %c0_i32_0 = arith.constant 0 : i32
    return %arg0, %arg1, %c0_i32 : i32, i32, i32
  }
}

</mosaic_0001>

<llo_original>
// kernel: tpu_custom_call.1
$region0: #{tpu_custom_call.1}
  #allocation0 [shape = 'u32[]', space=smem, size = 0x4, offset = 0x4, fixed_abs, tag = 'smem constant byte address 0x4 - core index']
  #allocation1 [shape = 'u32[144,128]{1,0:T(1,128)}', space=vmem, size = 0x12000, scoped, tag = 'internal scratch']
  %s0 = inlined_call_operand.hbm [shape: bf16[2,16,32], index: 0, kind: input, shape index: {}]
  %s1 = inlined_call_operand.hbm [shape: bf16[32,32], index: 1, kind: input, shape index: {}]
  %s2 = inlined_call_operand.vmem [shape: f32[1,32], index: 2, kind: input, shape index: {}]
  %s3 = inlined_call_operand.vmem [shape: f32[1,32], index: 3, kind: input, shape index: {}]
  %s4 = inlined_call_operand.vmem [shape: f32[1,32], index: 4, kind: input, shape index: {}]
  %s5 = inlined_call_operand.hbm [shape: bf16[2,16,32], index: 5, kind: output, shape index: {}]
  %s6 = sld [smem:[#allocation0]]
  $region61: #{tpu_custom_call.1} parent=0
    _
  %s8 = ssub.s32 1, %s6
  %s9 = scalar_select 0, %s8, %s6
  $region1: #{tpu_custom_call.1} parent=0
    #allocation2 [shape = 'u8[4096]{0}', space=vmem, size = 0x1000, scoped, tag = 'input window, operand 0']
    #allocation3 [shape = 's32[2]{0}', space=sflag, size = 0x8, scoped, tag = 'scoped memory for tpu_custom_call.1']
    #allocation4 [shape = 's32[2]{0}', space=sflag, size = 0x8, scoped, tag = 'scoped memory for tpu_custom_call.1']
    #allocation5 [shape = 'u8[8192]{0}', space=vmem, size = 0x2000, scoped, tag = 'input window, operand 1, single buffered']
    #allocation6 [shape = 's32[1]{0}', space=sflag, size = 0x4, scoped, tag = 'scoped memory for tpu_custom_call.1']
    #allocation7 [shape = 'u8[4096]{0}', space=vmem, size = 0x1000, scoped, tag = 'output window, operand 0']
    %10 = vsyncpa [#allocation3], 0
    %s11 = scalar_lea.sflag [#allocation3], 1
    %12 = vsyncpa %s11, 0
    %13 = vsyncpa [#allocation6], 0
    %14 = vsyncpa [#allocation4], 0
    %s15 = scalar_lea.sflag [#allocation4], 1
    %16 = vsyncpa %s15, 0
    loop: start=0, step=1, limit=6
    $region2: #{tpu_custom_call.1} parent=1 // loop_pre_header
      _
    $region3: #{tpu_custom_call.1} parent=1 // loop_header
      %s18 = sphi 0, %s22
      %p19 = scmp.ge.s32.totalorder %s18, 6
      %s25 = sphi 0, %s37
      %s26 = sphi 0, %s33
      %s27 = sphi 0, %s25
      %s28 = sphi 0, %s26
      %s29 = sphi 0, %s27
      %s30 = sphi 0, %s28
      %s42 = sphi 0, %s44
      %s45 = sphi 0, %s42
      %s46 = sphi 0, %s45
      %s62 = sphi 0, %s46
      %s66 = sphi 0, %s66
      %s68 = sphi 0, %s66
      %s69 = sphi 0, %s68
      %s83 = sphi 0, %s69
      %s87 = sphi 0, %s87
      %s89 = sphi 0, %s87
      %s90 = sphi 0, %s89
      %s104 = sphi 0, %s90
      %s108 = sphi 0, %s108
      %s110 = sphi 0, %s108
      %s111 = sphi 0, %s110
      %s125 = sphi 0, %s111
      %s129 = sphi 0, %s129
      %s131 = sphi 0, %s129
      %s132 = sphi 0, %s131
      %s146 = sphi 0, %s132
      %s154 = sphi 0, %s156
      %s157 = sphi 0, %s154
      %s158 = sphi 0, %s157
      %s174 = sphi 0, %s158
    $region4: #{tpu_custom_call.1} parent=1 // loop_header_branch
      %21 = sbr.rel (%p19) target = $region8
    $region5: #{tpu_custom_call.1} parent=1 // loop_body
      %s23 = ssub.s32 %s18, 1
      %s24 = ssub.s32 %s18, 2
      %s31 = sadd.s32 1, %s26
      %p32 = scmp.ge.s32.totalorder %s31, 2
      %s33 = scalar_select %p32, 0, %s31
      %s34 = sadd.s32 1, %s25
      %s35 = scalar_select %p32, %s34, %s25
      %p36 = scmp.ge.s32.totalorder %s35, 2
      %s37 = scalar_select %p36, 0, %s35
      %s38 = ssub.s32 %s25, %s37
      %s39 = ssub.s32 %s26, %s33
      %s40 = sor.u32 %s38, %s39
      %p41 = scmp.eq.s32.totalorder %s40, 0
      %s43 = sadd.s32 %s42, 1
      %s44 = scalar_select %p41, %s42, %s43
      %p47 = pneg %p41
      %p48 = scmp.eq.s32.totalorder %s18, 3
      %p49 = por %p47, %p48
      %p50 = scmp.ne.s32.totalorder %s42, %s45
      %p51 = scmp.eq.s32.totalorder %s18, 0
      %p52 = por %p50, %p51
      %p53 = scmp.ne.s32.totalorder %s42, %s45
      %p54 = scmp.eq.s32.totalorder %s23, 3
      %p55 = por %p53, %p54
      %p56 = scmp.ne.s32.totalorder %s45, %s46
      %p57 = scmp.eq.s32.totalorder %s23, 0
      %p58 = por %p56, %p57
      %p59 = scmp.ne.s32.totalorder %s45, %s46
      %p60 = scmp.eq.s32.totalorder %s24, 3
      %p61 = por %p59, %p60
      %p63 = scmp.ne.s32.totalorder %s46, %s62
      %p64 = scmp.eq.s32.totalorder %s24, 0
      %p65 = por %p63, %p64
      %s67 = sadd.s32 %s66, 1
      %p70 = scmp.eq.s32.totalorder %s18, 3
      %p71 = scmp.ne.s32.totalorder %s66, %s68
      %p72 = scmp.eq.s32.totalorder %s18, 0
      %p73 = por %p71, %p72
      %p74 = scmp.ne.s32.totalorder %s66, %s68
      %p75 = scmp.eq.s32.totalorder %s23, 3
      %p76 = por %p74, %p75
      %p77 = scmp.ne.s32.totalorder %s68, %s69
      %p78 = scmp.eq.s32.totalorder %s23, 0
      %p79 = por %p77, %p78
      %p80 = scmp.ne.s32.totalorder %s68, %s69
      %p81 = scmp.eq.s32.totalorder %s24, 3
      %p82 = por %p80, %p81
      %p84 = scmp.ne.s32.totalorder %s69, %s83
      %p85 = scmp.eq.s32.totalorder %s24, 0
      %p86 = por %p84, %p85
      %s88 = sadd.s32 %s87, 1
      %p91 = scmp.eq.s32.totalorder %s18, 3
      %p92 = scmp.ne.s32.totalorder %s87, %s89
      %p93 = scmp.eq.s32.totalorder %s18, 0
      %p94 = por %p92, %p93
      %p95 = scmp.ne.s32.totalorder %s87, %s89
      %p96 = scmp.eq.s32.totalorder %s23, 3
      %p97 = por %p95, %p96
      %p98 = scmp.ne.s32.totalorder %s89, %s90
      %p99 = scmp.eq.s32.totalorder %s23, 0
      %p100 = por %p98, %p99
      %p101 = scmp.ne.s32.totalorder %s89, %s90
      %p102 = scmp.eq.s32.totalorder %s24, 3
      %p103 = por %p101, %p102
      %p105 = scmp.ne.s32.totalorder %s90, %s104
      %p106 = scmp.eq.s32.totalorder %s24, 0
      %p107 = por %p105, %p106
      %s109 = sadd.s32 %s108, 1
      %p112 = scmp.eq.s32.totalorder %s18, 3
      %p113 = scmp.ne.s32.totalorder %s108, %s110
      %p114 = scmp.eq.s32.totalorder %s18, 0
      %p115 = por %p113, %p114
      %p116 = scmp.ne.s32.totalorder %s108, %s110
      %p117 = scmp.eq.s32.totalorder %s23, 3
      %p118 = por %p116, %p117
      %p119 = scmp.ne.s32.totalorder %s110, %s111
      %p120 = scmp.eq.s32.totalorder %s23, 0
      %p121 = por %p119, %p120
      %p122 = scmp.ne.s32.totalorder %s110, %s111
      %p123 = scmp.eq.s32.totalorder %s24, 3
      %p124 = por %p122, %p123
      %p126 = scmp.ne.s32.totalorder %s111, %s125
      %p127 = scmp.eq.s32.totalorder %s24, 0
      %p128 = por %p126, %p127
      %s130 = sadd.s32 %s129, 1
      %p133 = scmp.eq.s32.totalorder %s18, 3
      %p134 = scmp.ne.s32.totalorder %s129, %s131
      %p135 = scmp.eq.s32.totalorder %s18, 0
      %p136 = por %p134, %p135
      %p137 = scmp.ne.s32.totalorder %s129, %s131
      %p138 = scmp.eq.s32.totalorder %s23, 3
      %p139 = por %p137, %p138
      %p140 = scmp.ne.s32.totalorder %s131, %s132
      %p141 = scmp.eq.s32.totalorder %s23, 0
      %p142 = por %p140, %p141
      %p143 = scmp.ne.s32.totalorder %s131, %s132
      %p144 = scmp.eq.s32.totalorder %s24, 3
      %p145 = por %p143, %p144
      %p147 = scmp.ne.s32.totalorder %s132, %s146
      %p148 = scmp.eq.s32.totalorder %s24, 0
      %p149 = por %p147, %p148
      %s150 = ssub.s32 %s25, %s37
      %s151 = ssub.s32 %s26, %s33
      %s152 = sor.u32 %s150, %s151
      %p153 = scmp.eq.s32.totalorder %s152, 0
      %s155 = sadd.s32 %s154, 1
      %s156 = scalar_select %p153, %s154, %s155
      %p159 = pneg %p153
      %p160 = scmp.eq.s32.totalorder %s18, 3
      %p161 = por %p159, %p160
      %p162 = scmp.ne.s32.totalorder %s154, %s157
      %p163 = scmp.eq.s32.totalorder %s18, 0
      %p164 = por %p162, %p163
      %p165 = scmp.ne.s32.totalorder %s154, %s157
      %p166 = scmp.eq.s32.totalorder %s23, 3
      %p167 = por %p165, %p166
      %p168 = scmp.ne.s32.totalorder %s157, %s158
      %p169 = scmp.eq.s32.totalorder %s23, 0
      %p170 = por %p168, %p169
      %p171 = scmp.ne.s32.totalorder %s157, %s158
      %p172 = scmp.eq.s32.totalorder %s24, 3
      %p173 = por %p171, %p172
      %p175 = scmp.ne.s32.totalorder %s158, %s174
      %p176 = scmp.eq.s32.totalorder %s24, 0
      %p177 = por %p175, %p176
      %p178 = scmp.le.s32.totalorder 1, %s18
      %p179 = scmp.lt.s32.totalorder %s18, 5
      %p180 = pnand %p178, %p179
      %p181 = pneg %p180
      // Predicated region
      $region9: #{tpu_custom_call.1} parent=5 // pred_check
        _
      $region10: #{tpu_custom_call.1} parent=5 // pred_check_branch
        %183 = sbr.rel (%p180) target = $region12
      $region11: #{tpu_custom_call.1} parent=5 // pred_region
        %s184 = ssub.s32 %s18, 1
        // Predicated region
        $region13: #{tpu_custom_call.1} parent=11 // pred_check
          %p185 = pneg %p79
        $region14: #{tpu_custom_call.1} parent=11 // pred_check_branch
          %187 = sbr.rel (%p185) target = $region16
        $region15: #{tpu_custom_call.1} parent=11 // pred_region
          %s189 = ssub.s32 256, 256
          %190 = vsyncadd [#allocation6], %s189
          %s191 = sshll.u32 [#allocation5], 4
          %s192 = int_to_ptr.vmem [resolvable:$true] %s191
          %197 = dma.hbm_to_vmem [thread:$0]  %s1, 256, %s192, [#allocation6], 64, 64, 4
        $region16: #{tpu_custom_call.1} parent=11 // pred_fallthru
          _
        // Predicated region
        $region17: #{tpu_custom_call.1} parent=11 // pred_check
          %p198 = pneg %p100
        $region18: #{tpu_custom_call.1} parent=11 // pred_check_branch
          %200 = sbr.rel (%p198) target = $region20
        $region19: #{tpu_custom_call.1} parent=11 // pred_region
          _
        $region20: #{tpu_custom_call.1} parent=11 // pred_fallthru
          _
        // Predicated region
        $region21: #{tpu_custom_call.1} parent=11 // pred_check
          %p201 = pneg %p121
        $region22: #{tpu_custom_call.1} parent=11 // pred_check_branch
          %203 = sbr.rel (%p201) target = $region24
        $region23: #{tpu_custom_call.1} parent=11 // pred_region
          _
        $region24: #{tpu_custom_call.1} parent=11 // pred_fallthru
          _
        // Predicated region
        $region25: #{tpu_custom_call.1} parent=11 // pred_check
          %p204 = pneg %p142
        $region26: #{tpu_custom_call.1} parent=11 // pred_check_branch
          %206 = sbr.rel (%p204) target = $region28
        $region27: #{tpu_custom_call.1} parent=11 // pred_region
          _
        $region28: #{tpu_custom_call.1} parent=11 // pred_fallthru
          _
      $region12: #{tpu_custom_call.1} parent=5 // pred_fallthru
        _
      %p207 = scmp.lt.s32.totalorder %s18, 4
      // Predicated region
      $region29: #{tpu_custom_call.1} parent=5 // pred_check
        %p208 = pneg %p207
      $region30: #{tpu_custom_call.1} parent=5 // pred_check_branch
        %210 = sbr.rel (%p208) target = $region32
      $region31: #{tpu_custom_call.1} parent=5 // pred_region
        // Predicated region
        $region33: #{tpu_custom_call.1} parent=31 // pred_check
          %p211 = pneg %p52
        $region34: #{tpu_custom_call.1} parent=31 // pred_check_branch
          %213 = sbr.rel (%p211) target = $region36
        $region35: #{tpu_custom_call.1} parent=31 // pred_region
          %s214 = sand.u32 %s42, 1
          %s215 = scalar_lea.sflag [#allocation3], %s214
          %s216 = sand.u32 %s42, 1
          %s217 = smul.addr %s216, 4
          %s218 = scalar_lea.vmem [#allocation2], %s217
          %s220 = ssub.s32 64, 64
          %221 = vsyncadd %s215, %s220
          %s222 = smul.addr %s25, 2
          %s223 = sadd.s32 %s26, %s222
          %s224 = smul.addr %s223, 64
          %s225 = scalar_lea.hbm %s0, %s224
          %s227 = sshll.u32 %s218, 4
          %s228 = int_to_ptr.vmem [resolvable:$true] %s227
          %230 = dma.hbm_to_vmem [thread:$0]  %s225, 64, %s228, %s215
        $region36: #{tpu_custom_call.1} parent=31 // pred_fallthru
          _
      $region32: #{tpu_custom_call.1} parent=5 // pred_fallthru
        _
      %p231 = scmp.le.s32.totalorder 1, %s18
      %p232 = scmp.lt.s32.totalorder %s18, 5
      %p233 = pnand %p231, %p232
      %p234 = pneg %p233
      // Predicated region
      $region37: #{tpu_custom_call.1} parent=5 // pred_check
        _
      $region38: #{tpu_custom_call.1} parent=5 // pred_check_branch
        %236 = sbr.rel (%p233) target = $region40
      $region39: #{tpu_custom_call.1} parent=5 // pred_region
        %s237 = ssub.s32 %s18, 1
        %s238 = sand.u32 %s45, 1
        %s239 = scalar_lea.sflag [#allocation3], %s238
        %s240 = sand.u32 %s45, 1
        %s241 = smul.addr %s240, 4
        %s242 = scalar_lea.vmem [#allocation2], %s241
        // Predicated region
        $region41: #{tpu_custom_call.1} parent=39 // pred_check
          %p243 = pneg %p58
        $region42: #{tpu_custom_call.1} parent=39 // pred_check_branch
          %245 = sbr.rel (%p243) target = $region44
        $region43: #{tpu_custom_call.1} parent=39 // pred_region
          %246 = dma.done %s239, 64
        $region44: #{tpu_custom_call.1} parent=39 // pred_fallthru
          _
        // Predicated region
        $region45: #{tpu_custom_call.1} parent=39 // pred_check
          %p247 = pneg %p79
        $region46: #{tpu_custom_call.1} parent=39 // pred_check_branch
          %249 = sbr.rel (%p247) target = $region48
        $region47: #{tpu_custom_call.1} parent=39 // pred_region
          %250 = dma.done [#allocation6], 256
        $region48: #{tpu_custom_call.1} parent=39 // pred_fallthru
          _
        %s251 = sand.u32 %s45, 1
        %s252 = scalar_lea.sflag [#allocation3], %s251
        %s253 = sand.u32 %s45, 1
        %s254 = smul.addr %s253, 4
        %s255 = scalar_lea.vmem [#allocation2], %s254
        %p256 = pneg %p58
        %p257 = pneg %p55
        %p258 = pneg %p79
        %p259 = pneg %p76
        %p260 = pneg %p100
        %p261 = pneg %p97
        %p262 = pneg %p121
        %p263 = pneg %p118
        %p264 = pneg %p142
        %p265 = pneg %p139
        %p266 = pneg %p170
        %p267 = pneg %p167
        %s268 = sand.u32 %s157, 1
        %s269 = scalar_lea.sflag [#allocation4], %s268
        %s270 = sand.u32 %s157, 1
        %s271 = smul.addr %s270, 4
        %s272 = scalar_lea.vmem [#allocation7], %s271
        %v274 = vld [vmem:[%s242] sm:$0xf]
        %v275 = vld [vmem:[#allocation5] sm:$0xf]
        %v276 = vld [vmem:[#allocation5 + $0x4] sm:$0xf]
        %v277 = vld [vmem:[#allocation5 + $0x8] sm:$0xf]
        %v278 = vld [vmem:[#allocation5 + $0xc] sm:$0xf]
        %v279 = vld [vmem:[%s2] sm:$0x1]
        %v281 = vlaneseq
        %v282 = vshrl.u32 %v281, 7
        %v283 = vsub.s32 0, %v282
        %v284 = vrot.slane %v279, %v283
        %v290 = vunpack.c.l.b16 %v275
        %v291 = vunpack.c.l.b16 %v276
        %v292 = vunpack.c.l.b16 %v277
        %v293 = vunpack.c.l.b16 %v278
        %v294 = vpack.c.b16 %v291, %v290
        %v295 = vpack.c.b16 %v293, %v292
        %vm298 = vcmask 261120
        %v300 = vsel %vm298, %v274, 0
        %302 = vmatprep.subr.bf16.mxu0 0
        %303 = vmatpush1.bf16.msra.mxu0 %v294
        %304 = vmatprep.subr.bf16.mxu0 0
        %305 = vmatpush1.bf16.msra.mxu0 %v295
        %306 = vmatprep.subr.bf16.mxu0 0
        %307 = vmatpush1.bf16.msra.mxu0 0
        %308 = vmatprep.subr.bf16.mxu0 0
        %309 = vmatpush1.bf16.msra.mxu0 0
        %310 = vmatprep.subr.bf16.mxu0 0
        %311 = vmatpush1.bf16.msra.mxu0 0
        %312 = vmatprep.subr.bf16.mxu0 0
        %313 = vmatpush1.bf16.msra.mxu0 0
        %314 = vmatprep.subr.bf16.mxu0 0
        %315 = vmatpush1.bf16.msra.mxu0 0
        %316 = vmatprep.subr.bf16.mxu0 0
        %317 = vmatpush1.bf16.msra.mxu0 0
        %318 = vmatprep.subr.bf16.mxu0 0
        %319 = vmatpush1.bf16.msra.mxu0 0
        %320 = vmatprep.subr.bf16.mxu0 0
        %321 = vmatpush1.bf16.msra.mxu0 0
        %322 = vmatprep.subr.bf16.mxu0 0
        %323 = vmatpush1.bf16.msra.mxu0 0
        %324 = vmatprep.subr.bf16.mxu0 0
        %325 = vmatpush1.bf16.msra.mxu0 0
        %326 = vmatprep.subr.bf16.mxu0 0
        %327 = vmatpush1.bf16.msra.mxu0 0
        %328 = vmatprep.subr.bf16.mxu0 0
        %329 = vmatpush1.bf16.msra.mxu0 0
        %330 = vmatprep.subr.bf16.mxu0 0
        %331 = vmatpush1.bf16.msra.mxu0 0
        %332 = vmatprep.subr.bf16.mxu0 0
        %333 = vmatpush1.bf16.msra.mxu0 0
        %334 = vmatprep.mubr.bf16.mxu0 0
        %335 = vmatmul.mubr.bf16.gmra.mrb[0].mxu0 %v300
        %v336 = vpop.f32.mrb[0].mxu0
        %v337 = vadd.f32 %v284, %v336
        %v338 = vpop.f32.mrb[0].mxu0
        %v339 = vpop.f32.mrb[0].mxu0
        %v340 = vpop.f32.mrb[0].mxu0
        %341 = vdwg.mxu0
        %v342 = vld [vmem:[%s3] sm:$0x1]
        %v343 = vld [vmem:[%s4] sm:$0x1]
        %v344 = vsel %vm298, %v337, 0.0
        %345 = vadd.xlane.f32.xlu0 %v344
        %v346 = vpop.xlane.xlu0 %345
        %v347 = vrcp.pop 32.0
        %v348 = vmul.f32 %v346, %v347
        %v349 = vsub.f32 %v337, %v348
        %v350 = vmul.f32 %v349, %v349
        %v351 = vsel %vm298, %v350, 0.0
        %352 = vadd.xlane.f32.xlu0 %v351
        %v353 = vpop.xlane.xlu0 %352
        %v354 = vmul.f32 %v353, %v347
        %v355 = vadd.f32 %v354, 1e-06
        %v356 = vrsqrt.pop %v355
        %v357 = vmul.f32 %v349, %v356
        %v359 = vlaneseq
        %v360 = vshrl.u32 %v359, 7
        %v361 = vsub.s32 0, %v360
        %v362 = vrot.slane %v342, %v361
        %v364 = vmul.f32 %v357, %v362
        %v366 = vlaneseq
        %v367 = vshrl.u32 %v366, 7
        %v368 = vsub.s32 0, %v367
        %v369 = vrot.slane %v343, %v368
        %v371 = vadd.f32 %v364, %v369
        %v372 = vpack.c.bf16 %v371, %v371
        %vm373 = vcmask 257024
        %374 = vst.msk [vmem:[%s272] sm:$0xf] %vm373, %v372
        %s375 = sand.u32 %s157, 1
        %s376 = scalar_lea.sflag [#allocation4], %s375
        %s377 = sand.u32 %s157, 1
        %s378 = smul.addr %s377, 4
        %s379 = scalar_lea.vmem [#allocation7], %s378
        // Predicated region
        $region49: #{tpu_custom_call.1} parent=39 // pred_check
          %p380 = pneg %p167
        $region50: #{tpu_custom_call.1} parent=39 // pred_check_branch
          %382 = sbr.rel (%p380) target = $region52
        $region51: #{tpu_custom_call.1} parent=39 // pred_region
          %s384 = ssub.s32 64, 64
          %385 = vsyncadd %s376, %s384
          %s386 = smul.addr %s27, 2
          %s387 = sadd.s32 %s28, %s386
          %s388 = smul.addr %s387, 64
          %s389 = scalar_lea.hbm %s5, %s388
          %s391 = sshll.u32 %s379, 4
          %s392 = int_to_ptr.vmem [resolvable:$true] %s391
          %394 = dma.vmem_to_hbm [thread:$0]  %s392, 64, %s389, %s376
        $region52: #{tpu_custom_call.1} parent=39 // pred_fallthru
          _
      $region40: #{tpu_custom_call.1} parent=5 // pred_fallthru
        _
      %p395 = scmp.le.s32.totalorder 2, %s18
      // Predicated region
      $region53: #{tpu_custom_call.1} parent=5 // pred_check
        %p396 = pneg %p395
      $region54: #{tpu_custom_call.1} parent=5 // pred_check_branch
        %398 = sbr.rel (%p396) target = $region56
      $region55: #{tpu_custom_call.1} parent=5 // pred_region
        %s399 = ssub.s32 %s18, 2
        // Predicated region
        $region57: #{tpu_custom_call.1} parent=55 // pred_check
          %p400 = pneg %p173
        $region58: #{tpu_custom_call.1} parent=55 // pred_check_branch
          %402 = sbr.rel (%p400) target = $region60
        $region59: #{tpu_custom_call.1} parent=55 // pred_region
          %s403 = sand.u32 %s158, 1
          %s404 = scalar_lea.sflag [#allocation4], %s403
          %s405 = sand.u32 %s158, 1
          %s406 = smul.addr %s405, 4
          %s407 = scalar_lea.vmem [#allocation7], %s406
          %408 = dma.done %s404, 64
        $region60: #{tpu_custom_call.1} parent=55 // pred_fallthru
          _
      $region56: #{tpu_custom_call.1} parent=5 // pred_fallthru
        _
    $region6: #{tpu_custom_call.1} parent=1 // loop_footer
      %s22 = sadd.s32 1, %s18
    $region7: #{tpu_custom_call.1} parent=1 // loop_footer_branch
      %17 = sbr.rel target = $region3
    $region8: #{tpu_custom_call.1} parent=1 // loop_exit
      _
    %409 = vsyncpa [#allocation3], 1
    %s410 = scalar_lea.sflag [#allocation3], 1
    %411 = vsyncpa %s410, 1
    %412 = vsyncpa [#allocation6], 1
    %413 = vsyncpa [#allocation4], 1
    %s414 = scalar_lea.sflag [#allocation4], 1
    %415 = vsyncpa %s414, 1

</llo_original>
